<compile_context>
chip_gen: v7x
topology: tpu7x:2x2x1
jax: 0.10.0
libtpu: 0.0.40
codegen_flags: <defaults>
</compile_context>

<pallas_src>
import functools

import jax
import jax.numpy as jnp
from jax.experimental import pallas as pl
from jax.experimental.pallas import tpu as pltpu


def bottleneck_kernel(x_ref, w1t_ref, b1_ref, w2_ref, o_ref, m_sc, l_sc, acc_sc,
                      *, tanh_dtype):
    # x_ref : (TB, TS, D)        w1t_ref: (D, D) pre-transposed (in, out)
    # b1_ref: (1, D) f32         w2_ref : (1, D) f32            o_ref: (TB, D)
    # scratch: m_sc (TB,1) f32, l_sc (TB,1) f32, acc_sc (TB,D) f32
    s = pl.program_id(1)

    @pl.when(s == 0)
    def _():
        m_sc[...] = jnp.full_like(m_sc, -jnp.inf)
        l_sc[...] = jnp.zeros_like(l_sc)
        acc_sc[...] = jnp.zeros_like(acc_sc)

    x = x_ref[...]                                   # native dtype (f32 or bf16)
    tb, ts, d = x.shape

    # --- fc1: one flattened big-M matmul on the MXU; RHS is already (in, out). ---
    x2 = x.reshape(tb * ts, d)
    ui = jnp.dot(x2, w1t_ref[...], preferred_element_type=jnp.float32)   # (TB*TS, D) f32
    ui = ui + b1_ref[...]                            # b1 already f32, (1, D)
    # tanh on the EUP; bf16 when the pipeline is bf16 (2x EUP throughput on v6e/v7x).
    ui = jnp.tanh(ui.astype(tanh_dtype)).astype(jnp.float32)
    ui3 = ui.reshape(tb, ts, d)

    # --- fc2 (D -> 1, no bias): VPU multiply + lane reduction (keeps the MXU free). ---
    logits = jnp.sum(ui3 * w2_ref[...][None, :, :], axis=-1, keepdims=True)  # (TB, TS, 1)

    # --- online softmax over the sequence (grid axis 1) + weighted-sum accumulation ---
    m_prev = m_sc[...]                                            # (TB, 1)
    m_new = jnp.maximum(m_prev, jnp.max(logits, axis=1))          # (TB, 1)
    alpha = jnp.exp(m_prev - m_new)                               # (TB, 1)
    p = jnp.exp(logits - m_new[:, None, :])                       # (TB, TS, 1)
    l_sc[...] = alpha * l_sc[...] + jnp.sum(p, axis=1)            # (TB, 1)
    contrib = jnp.sum(x.astype(jnp.float32) * p, axis=1)          # (TB, D)
    acc_sc[...] = alpha * acc_sc[...] + contrib
    m_sc[...] = m_new

    @pl.when(s == pl.num_programs(1) - 1)
    def _():
        l = l_sc[...]
        inv_l = pl.reciprocal(l, approx=True)        # EUP vrcp (own VLIW slot)
        inv_l = inv_l * (2.0 - l * inv_l)            # one Newton step -> ~f32 accuracy
        o_ref[...] = (acc_sc[...] * inv_l).astype(o_ref.dtype)


# ----------------------------- tiling heuristics -------------------------------------


def _vmem_capacity_bytes():
    """Per-TensorCore VMEM capacity; conservative fallback is v7x's 64 MiB."""
    try:
        return int(pltpu.get_tpu_info().vmem_capacity_bytes)
    except Exception:
        return 64 << 20


def _largest_divisor(n, cap, multiple=1):
    """Largest divisor of n that is <= cap and (a multiple of `multiple` or == n)."""
    cap = max(1, min(n, cap))
    for d in range(cap, 0, -1):
        if n % d == 0 and (d % multiple == 0 or d == n):
            return d
    return n  # fall back to the full dimension (always layout-legal)


def _pick_block_b(B):
    """Small batch tile: multiple of 8 (output second-minor dim) or full B; capped at
    16 and at B//2 when B > 8 so the parallel batch axis has >= 2 steps (v7x megacore)."""
    cap = B if B <= 8 else min(16, B // 2)
    cap = max(1, min(B, cap))
    for d in range(cap, 0, -1):
        if B % d == 0 and d % 8 == 0:
            return d
    # No multiple-of-8 divisor <= cap: use the full batch (block dim == array dim is
    # always legal); block_s is then shrunk by the VMEM budget below.
    return B


def _auto_blocks(B, S, D, x_dtype, w_itemsize, vmem_budget):
    x_itemsize = jnp.dtype(x_dtype).itemsize
    # Sublane packing of the x tile's second-minor dim: 8 (f32), 16 (bf16), 32 (8-bit).
    mult = 8 * max(1, 4 // x_itemsize)

    block_b = _pick_block_b(B)

    # Bytes resident regardless of the x tile. The Pallas pipeline double-buffers every
    # input even with a constant index_map, so W1/b1/w2 are counted twice.
    fixed = (2 * D * D * w_itemsize            # W1 (2 buffers)
             + 2 * 2 * D * 4                   # b1 + w2 in f32 (2 buffers)
             + 2 * block_b * D * x_itemsize    # output tile (2 buffers)
             + block_b * (D + 2) * 4)          # f32 scratch (m, l, acc)
    avail = max(vmem_budget - fixed, 1 << 20)

    # Per (batch, seq) row: double-buffered input + f32 body temporaries (ui, x_f32, 1 tmp).
    per_row = 2 * D * x_itemsize + 3 * D * 4
    max_rows = int(min(8192, max(mult, avail // per_row)))

    block_s = _largest_divisor(S, max(mult, max_rows // block_b), multiple=mult)
    return block_b, block_s


# ----------------------------------- wrapper ------------------------------------------


def bottleneck_layer(x, w1, b1, w2, *, block_b=None, block_s=None):
    """x: (B, S, D); w1: (D, D) torch layout (out, in); b1: (D,); w2: (1, D) or (D,)."""
    B, S, D = x.shape

    cap_bytes = _vmem_capacity_bytes()
    budget = int(0.80 * cap_bytes)            # generation-aware tile budget

    auto_b, auto_s = _auto_blocks(B, S, D, x.dtype, jnp.dtype(w1.dtype).itemsize, budget)
    if block_b is None:
        block_b = auto_b
    if block_s is None:
        block_s = auto_s
    assert B % block_b == 0 and S % block_s == 0, (block_b, block_s, B, S)
    grid = (B // block_b, S // block_s)

    # One-time layout plumbing outside the kernel (amortized over all grid steps):
    w1t = jnp.asarray(w1).T                          # (in, out); native dtype for the MXU
    b1r = jnp.asarray(b1, dtype=jnp.float32).reshape(1, D)
    w2r = jnp.asarray(w2, dtype=jnp.float32).reshape(1, D)

    tanh_dtype = jnp.bfloat16 if x.dtype == jnp.bfloat16 else jnp.float32
    kernel = functools.partial(bottleneck_kernel, tanh_dtype=tanh_dtype)

    vmem_limit = int(min(max(budget, 32 << 20), cap_bytes))

    grid_spec = pltpu.PrefetchScalarGridSpec(
        num_scalar_prefetch=0,
        grid=grid,
        in_specs=[
            pl.BlockSpec((block_b, block_s, D), lambda b, s: (b, s, 0)),
            pl.BlockSpec((D, D), lambda b, s: (0, 0)),   # W1.T resident across all steps
            pl.BlockSpec((1, D), lambda b, s: (0, 0)),   # b1 (f32)
            pl.BlockSpec((1, D), lambda b, s: (0, 0)),   # w2 (f32)
        ],
        out_specs=pl.BlockSpec((block_b, D), lambda b, s: (b, 0)),
        scratch_shapes=[
            pltpu.VMEM((block_b, 1), jnp.float32),   # running max    m
            pltpu.VMEM((block_b, 1), jnp.float32),   # running denom  l
            pltpu.VMEM((block_b, D), jnp.float32),   # running weighted sum
        ],
    )

    return pl.pallas_call(
        kernel,
        out_shape=jax.ShapeDtypeStruct((B, D), x.dtype),
        grid_spec=grid_spec,
        compiler_params=pltpu.CompilerParams(
            dimension_semantics=("parallel", "arbitrary"),
            vmem_limit_bytes=vmem_limit,
        ),
    )(x, w1t, b1r, w2r)


def bottleneck_layer_ref(x, w1, b1, w2):
    """Pure-JAX reference (mirrors the PyTorch forward)."""
    ui = jnp.tanh(jnp.einsum("bsd,od->bso", x, w1) + b1)   # fc1 + tanh
    logits = jnp.einsum("bsd,od->bso", ui, w2)             # fc2 (no bias)
    ai = jax.nn.softmax(logits, axis=1)                    # softmax over seq
    return jnp.sum(x * ai, axis=1)                         # (B, D)


def _run_case(name, B, S, D, dtype, block_b=None, block_s=None, tol=2e-3):
    key = jax.random.PRNGKey(0)
    kx, kw1, kb1, kw2 = jax.random.split(key, 4)
    x = jax.random.normal(kx, (B, S, D), dtype=jnp.float32).astype(dtype)
    # torch Linear layout: (out_features, in_features)
    w1 = (jax.random.normal(kw1, (D, D), dtype=jnp.float32) / jnp.sqrt(D)).astype(dtype)
    b1 = (0.1 * jax.random.normal(kb1, (D,), dtype=jnp.float32)).astype(dtype)
    w2 = (jax.random.normal(kw2, (1, D), dtype=jnp.float32) / jnp.sqrt(D)).astype(dtype)

    out = jax.block_until_ready(
        bottleneck_layer(x, w1, b1, w2, block_b=block_b, block_s=block_s))
    ref = jax.block_until_ready(
        bottleneck_layer_ref(x.astype(jnp.float32), w1.astype(jnp.float32),
                             b1.astype(jnp.float32), w2.astype(jnp.float32)))
    assert out.shape == (B, D), (name, out.shape)
    err = float(jnp.max(jnp.abs(out.astype(jnp.float32) - ref)))
    assert err < tol, f"{name}: max abs err = {err}"


if __name__ == "__main__":
    # Small shapes implied by the module: batch=2, seq=8, d_model=32 (single block, grid (1,1)).
    _run_case("tiny_f32", B=2, S=8, D=32, dtype=jnp.float32, tol=2e-3)
    # Multi-step grid: 2 batch tiles x 4 seq chunks exercises the online softmax + pipelining.
    _run_case("grid_f32", B=16, S=32, D=128, dtype=jnp.float32,
              block_b=8, block_s=8, tol=2e-3)
    # bf16 inputs with explicit small blocks (bf16 MXU operands, bf16 tanh, f32 softmax).
    _run_case("grid_bf16", B=16, S=32, D=128, dtype=jnp.bfloat16,
              block_b=8, block_s=8, tol=2e-2)
    # Auto-tiled bf16 case: exercises the VMEM-budget-driven block_b/block_s heuristics.
    _run_case("auto_bf16", B=16, S=64, D=128, dtype=jnp.bfloat16, tol=2e-2)
    print("KERNEL_OK")
</pallas_src>

<mosaic_0001>
module attributes {stable_mosaic.version = 11 : i64} {
  func.func @bottleneck_kernel(%arg0: i32, %arg1: i32, %arg2: memref<2x8x32xf32, #tpu.memory_space<vmem>>, %arg3: memref<32x32xf32, #tpu.memory_space<vmem>>, %arg4: memref<1x32xf32, #tpu.memory_space<vmem>>, %arg5: memref<1x32xf32, #tpu.memory_space<vmem>>, %arg6: memref<2x32xf32, #tpu.memory_space<vmem>>, %arg7: memref<2x1xf32, #tpu.memory_space<vmem>>, %arg8: memref<2x1xf32, #tpu.memory_space<vmem>>, %arg9: memref<2x32xf32, #tpu.memory_space<vmem>>) attributes {dimension_semantics = [#tpu.dimension_semantics<parallel>, #tpu.dimension_semantics<arbitrary>], iteration_bounds = array<i64: 1, 1>, scalar_prefetch = 0 : i64, scratch_operands = 3 : i64, tpu.core_type = #tpu.core_type<tc>, window_params = [{transform_indices = @transform_0, window_bounds = array<i64: 2, 8, 32>}, {pipeline_mode = #tpu.pipeline_mode<synchronous>, transform_indices = @transform_1, window_bounds = array<i64: 32, 32>}, {pipeline_mode = #tpu.pipeline_mode<synchronous>, transform_indices = @transform_2, window_bounds = array<i64: 1, 32>}, {pipeline_mode = #tpu.pipeline_mode<synchronous>, transform_indices = @transform_3, window_bounds = array<i64: 1, 32>}, {transform_indices = @transform_4, window_bounds = array<i64: 2, 32>}]} {
    %c0_i32 = arith.constant 0 : i32
    %0 = arith.cmpi eq, %arg1, %c0_i32 : i32
    %1 = arith.extui %0 : i1 to i32
    %c0_i32_0 = arith.constant 0 : i32
    %2 = arith.cmpi ne, %1, %c0_i32_0 : i32
    scf.if %2 {
      %cst_27 = arith.constant 0xFF800000 : f32
      %44 = vector.broadcast %cst_27 : f32 to vector<2x1xf32>
      %c0_28 = arith.constant 0 : index
      %c0_29 = arith.constant 0 : index
      %45 = vector.load %arg7[%c0_28, %c0_29] : memref<2x1xf32, #tpu.memory_space<vmem>>, vector<2x1xf32>
      tpu.vector_store %arg7[%c0_28, %c0_29], %44 {strides = array<i32>} : memref<2x1xf32, #tpu.memory_space<vmem>>, vector<2x1xf32>,
      %cst_30 = arith.constant 0.000000e+00 : f32
      %46 = vector.broadcast %cst_30 : f32 to vector<2x1xf32>
      %c0_31 = arith.constant 0 : index
      %c0_32 = arith.constant 0 : index
      %47 = vector.load %arg8[%c0_31, %c0_32] : memref<2x1xf32, #tpu.memory_space<vmem>>, vector<2x1xf32>
      tpu.vector_store %arg8[%c0_31, %c0_32], %46 {strides = array<i32>} : memref<2x1xf32, #tpu.memory_space<vmem>>, vector<2x1xf32>,
      %cst_33 = arith.constant 0.000000e+00 : f32
      %48 = vector.broadcast %cst_33 : f32 to vector<2x32xf32>
      %c0_34 = arith.constant 0 : index
      %c0_35 = arith.constant 0 : index
      %49 = vector.load %arg9[%c0_34, %c0_35] : memref<2x32xf32, #tpu.memory_space<vmem>>, vector<2x32xf32>
      tpu.vector_store %arg9[%c0_34, %c0_35], %48 {strides = array<i32>} : memref<2x32xf32, #tpu.memory_space<vmem>>, vector<2x32xf32>,
    } else {
    }
    %c0 = arith.constant 0 : index
    %c0_1 = arith.constant 0 : index
    %c0_2 = arith.constant 0 : index
    %3 = vector.load %arg2[%c0, %c0_1, %c0_2] : memref<2x8x32xf32, #tpu.memory_space<vmem>>, vector<2x8x32xf32>
    %4 = vector.shape_cast %3 : vector<2x8x32xf32> to vector<16x32xf32>
    %c0_3 = arith.constant 0 : index
    %c0_4 = arith.constant 0 : index
    %5 = vector.load %arg3[%c0_3, %c0_4] : memref<32x32xf32, #tpu.memory_space<vmem>>, vector<32x32xf32>
    %cst = arith.constant dense<0.000000e+00> : vector<16x32xf32>
    %6 = tpu.matmul %4, %5, %cst {dimension_numbers = #tpu.dot_dimension_numbers<[1], [0], [0], [1], [0, 0, 1, 1], [], []>} : vector<16x32xf32>, vector<32x32xf32>, vector<16x32xf32> -> vector<16x32xf32>
    %c0_5 = arith.constant 0 : index
    %c0_6 = arith.constant 0 : index
    %7 = vector.load %arg4[%c0_5, %c0_6] : memref<1x32xf32, #tpu.memory_space<vmem>>, vector<1x32xf32>
    %8 = vector.broadcast %7 : vector<1x32xf32> to vector<16x32xf32>
    %9 = arith.addf %6, %8 : vector<16x32xf32>
    %10 = math.tanh %9 : vector<16x32xf32>
    %11 = vector.shape_cast %10 : vector<16x32xf32> to vector<2x8x32xf32>
    %c0_7 = arith.constant 0 : index
    %c0_8 = arith.constant 0 : index
    %12 = vector.load %arg5[%c0_7, %c0_8] : memref<1x32xf32, #tpu.memory_space<vmem>>, vector<1x32xf32>
    %13 = vector.shape_cast %12 : vector<1x32xf32> to vector<1x1x32xf32>
    %14 = vector.broadcast %13 : vector<1x1x32xf32> to vector<2x8x32xf32>
    %15 = arith.mulf %11, %14 : vector<2x8x32xf32>
    %cst_9 = arith.constant dense<0.000000e+00> : vector<2x8xf32>
    %16 = vector.multi_reduction <add>, %15, %cst_9 [2] : vector<2x8x32xf32> to vector<2x8xf32>
    %17 = vector.shape_cast %16 : vector<2x8xf32> to vector<2x8x1xf32>
    %c0_10 = arith.constant 0 : index
    %c0_11 = arith.constant 0 : index
    %18 = vector.load %arg7[%c0_10, %c0_11] : memref<2x1xf32, #tpu.memory_space<vmem>>, vector<2x1xf32>
    %cst_12 = arith.constant dense<0xFF800000> : vector<2x1xf32>
    %19 = vector.multi_reduction <maximumf>, %17, %cst_12 [1] : vector<2x8x1xf32> to vector<2x1xf32>
    %20 = arith.maximumf %18, %19 : vector<2x1xf32>
    %21 = arith.subf %18, %20 : vector<2x1xf32>
    %22 = math.exp %21 : vector<2x1xf32>
    %23 = vector.shape_cast %20 : vector<2x1xf32> to vector<2x1x1xf32>
    %24 = vector.broadcast %23 : vector<2x1x1xf32> to vector<2x8x1xf32>
    %25 = arith.subf %17, %24 : vector<2x8x1xf32>
    %26 = math.exp %25 : vector<2x8x1xf32>
    %c0_13 = arith.constant 0 : index
    %c0_14 = arith.constant 0 : index
    %27 = vector.load %arg8[%c0_13, %c0_14] : memref<2x1xf32, #tpu.memory_space<vmem>>, vector<2x1xf32>
    %28 = arith.mulf %22, %27 : vector<2x1xf32>
    %cst_15 = arith.constant dense<0.000000e+00> : vector<2x1xf32>
    %29 = vector.multi_reduction <add>, %26, %cst_15 [1] : vector<2x8x1xf32> to vector<2x1xf32>
    %30 = arith.addf %28, %29 : vector<2x1xf32>
    %c0_16 = arith.constant 0 : index
    %c0_17 = arith.constant 0 : index
    %31 = vector.load %arg8[%c0_16, %c0_17] : memref<2x1xf32, #tpu.memory_space<vmem>>, vector<2x1xf32>
    tpu.vector_store %arg8[%c0_16, %c0_17], %30 {strides = array<i32>} : memref<2x1xf32, #tpu.memory_space<vmem>>, vector<2x1xf32>,
    %32 = vector.broadcast %26 : vector<2x8x1xf32> to vector<2x8x32xf32>
    %33 = arith.mulf %3, %32 : vector<2x8x32xf32>
    %cst_18 = arith.constant dense<0.000000e+00> : vector<2x32xf32>
    %34 = vector.multi_reduction <add>, %33, %cst_18 [1] : vector<2x8x32xf32> to vector<2x32xf32>
    %c0_19 = arith.constant 0 : index
    %c0_20 = arith.constant 0 : index
    %35 = vector.load %arg9[%c0_19, %c0_20] : memref<2x32xf32, #tpu.memory_space<vmem>>, vector<2x32xf32>
    %36 = vector.broadcast %22 : vector<2x1xf32> to vector<2x32xf32>
    %37 = arith.mulf %36, %35 : vector<2x32xf32>
    %38 = arith.addf %37, %34 : vector<2x32xf32>
    %c0_21 = arith.constant 0 : index
    %c0_22 = arith.constant 0 : index
    %39 = vector.load %arg9[%c0_21, %c0_22] : memref<2x32xf32, #tpu.memory_space<vmem>>, vector<2x32xf32>
    tpu.vector_store %arg9[%c0_21, %c0_22], %38 {strides = array<i32>} : memref<2x32xf32, #tpu.memory_space<vmem>>, vector<2x32xf32>,
    %c0_23 = arith.constant 0 : index
    %c0_24 = arith.constant 0 : index
    %40 = vector.load %arg7[%c0_23, %c0_24] : memref<2x1xf32, #tpu.memory_space<vmem>>, vector<2x1xf32>
    tpu.vector_store %arg7[%c0_23, %c0_24], %20 {strides = array<i32>} : memref<2x1xf32, #tpu.memory_space<vmem>>, vector<2x1xf32>,
    %c0_i32_25 = arith.constant 0 : i32
    %41 = arith.cmpi eq, %arg1, %c0_i32_25 : i32
    %42 = arith.extui %41 : i1 to i32
    %c0_i32_26 = arith.constant 0 : i32
    %43 = arith.cmpi ne, %42, %c0_i32_26 : i32
    scf.if %43 {
      %c0_27 = arith.constant 0 : index
      %c0_28 = arith.constant 0 : index
      %44 = vector.load %arg8[%c0_27, %c0_28] : memref<2x1xf32, #tpu.memory_space<vmem>>, vector<2x1xf32>
      %45 = tpu.reciprocal %44 {approx = true} : vector<2x1xf32> -> vector<2x1xf32>
      %46 = arith.mulf %44, %45 : vector<2x1xf32>
      %cst_29 = arith.constant 2.000000e+00 : f32
      %47 = vector.broadcast %cst_29 : f32 to vector<2x1xf32>
      %48 = arith.subf %47, %46 : vector<2x1xf32>
      %49 = arith.mulf %45, %48 : vector<2x1xf32>
      %c0_30 = arith.constant 0 : index
      %c0_31 = arith.constant 0 : index
      %50 = vector.load %arg9[%c0_30, %c0_31] : memref<2x32xf32, #tpu.memory_space<vmem>>, vector<2x32xf32>
      %51 = vector.broadcast %49 : vector<2x1xf32> to vector<2x32xf32>
      %52 = arith.mulf %50, %51 : vector<2x32xf32>
      %c0_32 = arith.constant 0 : index
      %c0_33 = arith.constant 0 : index
      %53 = vector.load %arg6[%c0_32, %c0_33] : memref<2x32xf32, #tpu.memory_space<vmem>>, vector<2x32xf32>
      tpu.vector_store %arg6[%c0_32, %c0_33], %52 {strides = array<i32>} : memref<2x32xf32, #tpu.memory_space<vmem>>, vector<2x32xf32>,
    } else {
    }
    return
  }
  func.func @transform_0(%arg0: i32, %arg1: i32) -> (i32, i32, i32) {
    %c0_i32 = arith.constant 0 : i32
    %c0_i32_0 = arith.constant 0 : i32
    return %arg0, %arg1, %c0_i32 : i32, i32, i32
  }
  func.func @transform_1(%arg0: i32, %arg1: i32) -> (i32, i32) {
    %c0_i32 = arith.constant 0 : i32
    %c0_i32_0 = arith.constant 0 : i32
    %c0_i32_1 = arith.constant 0 : i32
    return %c0_i32, %c0_i32_0 : i32, i32
  }
  func.func @transform_2(%arg0: i32, %arg1: i32) -> (i32, i32) {
    %c0_i32 = arith.constant 0 : i32
    %c0_i32_0 = arith.constant 0 : i32
    %c0_i32_1 = arith.constant 0 : i32
    return %c0_i32, %c0_i32_0 : i32, i32
  }
  func.func @transform_3(%arg0: i32, %arg1: i32) -> (i32, i32) {
    %c0_i32 = arith.constant 0 : i32
    %c0_i32_0 = arith.constant 0 : i32
    %c0_i32_1 = arith.constant 0 : i32
    return %c0_i32, %c0_i32_0 : i32, i32
  }
  func.func @transform_4(%arg0: i32, %arg1: i32) -> (i32, i32) {
    %c0_i32 = arith.constant 0 : i32
    %c0_i32_0 = arith.constant 0 : i32
    return %arg0, %c0_i32 : i32, i32
  }
}

</mosaic_0001>

<llo_original>
// kernel: tpu_custom_call.1
$region0: #{tpu_custom_call.1}
  #allocation0 [shape = 'u32[]', space=smem, size = 0x4, offset = 0x4, fixed_abs, tag = 'smem constant byte address 0x4 - core index']
  #allocation1 [shape = 'u32[144,128]{1,0:T(1,128)}', space=vmem, size = 0x12000, scoped, tag = 'internal scratch']
  #allocation2 [shape = 'f32[2,1]{1,0:T(2,128)}', space=vmem, size = 0x400, scoped, tag = 'scratch operand']
  #allocation3 [shape = 'f32[2,1]{1,0:T(2,128)}', space=vmem, size = 0x400, scoped, tag = 'scratch operand']
  #allocation4 [shape = 'f32[2,32]{1,0:T(2,128)}', space=vmem, size = 0x400, scoped, tag = 'scratch operand']
  %s0 = inlined_call_operand.hbm [shape: f32[2,8,32], index: 0, kind: input, shape index: {}]
  %s1 = inlined_call_operand.hbm [shape: f32[32,32], index: 1, kind: input, shape index: {}]
  %s2 = inlined_call_operand.vmem [shape: f32[1,32], index: 2, kind: input, shape index: {}]
  %s3 = inlined_call_operand.vmem [shape: f32[1,32], index: 3, kind: input, shape index: {}]
  %s4 = inlined_call_operand.hbm [shape: f32[2,32], index: 4, kind: output, shape index: {}]
  %s5 = sld [smem:[#allocation0]]
  $region42: #{tpu_custom_call.1} parent=0
    _
  %s7 = ssub.s32 1, %s5
  %s8 = scalar_select 0, %s7, %s5
  $region1: #{tpu_custom_call.1} parent=0
    #allocation5 [shape = 'u8[8192]{0}', space=vmem, size = 0x2000, scoped, tag = 'input window, operand 0, single buffered']
    #allocation6 [shape = 's32[1]{0}', space=sflag, size = 0x4, scoped, tag = 'scoped memory for tpu_custom_call.1']
    #allocation7 [shape = 's32[1]{0}', space=sflag, size = 0x4, scoped, tag = 'scoped memory for tpu_custom_call.1']
    #allocation8 [shape = 'u8[16384]{0}', space=vmem, size = 0x4000, scoped, tag = 'input window, operand 1, single buffered']
    #allocation9 [shape = 's32[1]{0}', space=sflag, size = 0x4, scoped, tag = 'scoped memory for tpu_custom_call.1']
    #allocation10 [shape = 'u8[1024]{0}', space=vmem, size = 0x400, scoped, tag = 'output window, operand 0, single buffered']
    %9 = vsyncpa [#allocation6], 0
    %10 = vsyncpa [#allocation9], 0
    %11 = vsyncpa [#allocation7], 0
    // Predicated region
    $region2: #{tpu_custom_call.1} parent=1 // pred_check
      _
    $region3: #{tpu_custom_call.1} parent=1 // pred_check_branch
      %13 = sbr.rel (0) target = $region5
    $region4: #{tpu_custom_call.1} parent=1 // pred_region
      %s15 = ssub.s32 256, 256
      %16 = vsyncadd [#allocation6], %s15
      %s17 = sshll.u32 [#allocation5], 4
      %s18 = int_to_ptr.vmem [resolvable:$true] %s17
      %23 = dma.hbm_to_vmem [thread:$0]  %s0, 256, %s18, [#allocation6], 128, 128, 8
    $region5: #{tpu_custom_call.1} parent=1 // pred_fallthru
      _
    // Predicated region
    $region6: #{tpu_custom_call.1} parent=1 // pred_check
      _
    $region7: #{tpu_custom_call.1} parent=1 // pred_check_branch
      %25 = sbr.rel (0) target = $region9
    $region8: #{tpu_custom_call.1} parent=1 // pred_region
      %s27 = ssub.s32 512, 512
      %28 = vsyncadd [#allocation9], %s27
      %s29 = sshll.u32 [#allocation8], 4
      %s30 = int_to_ptr.vmem [resolvable:$true] %s29
      %35 = dma.hbm_to_vmem [thread:$0]  %s1, 512, %s30, [#allocation9], 128, 128, 8
    $region9: #{tpu_custom_call.1} parent=1 // pred_fallthru
      _
    // Predicated region
    $region10: #{tpu_custom_call.1} parent=1 // pred_check
      _
    $region11: #{tpu_custom_call.1} parent=1 // pred_check_branch
      %37 = sbr.rel (0) target = $region13
    $region12: #{tpu_custom_call.1} parent=1 // pred_region
      _
    $region13: #{tpu_custom_call.1} parent=1 // pred_fallthru
      _
    // Predicated region
    $region14: #{tpu_custom_call.1} parent=1 // pred_check
      _
    $region15: #{tpu_custom_call.1} parent=1 // pred_check_branch
      %39 = sbr.rel (0) target = $region17
    $region16: #{tpu_custom_call.1} parent=1 // pred_region
      _
    $region17: #{tpu_custom_call.1} parent=1 // pred_fallthru
      _
    // Predicated region
    $region18: #{tpu_custom_call.1} parent=1 // pred_check
      _
    $region19: #{tpu_custom_call.1} parent=1 // pred_check_branch
      %41 = sbr.rel (0) target = $region21
    $region20: #{tpu_custom_call.1} parent=1 // pred_region
      %42 = dma.done [#allocation6], 256
    $region21: #{tpu_custom_call.1} parent=1 // pred_fallthru
      _
    // Predicated region
    $region22: #{tpu_custom_call.1} parent=1 // pred_check
      _
    $region23: #{tpu_custom_call.1} parent=1 // pred_check_branch
      %44 = sbr.rel (0) target = $region25
    $region24: #{tpu_custom_call.1} parent=1 // pred_region
      %45 = dma.done [#allocation9], 512
    $region25: #{tpu_custom_call.1} parent=1 // pred_fallthru
      _
    %p46 = scmp.eq.s32.totalorder 0, 0
    // Predicated region
    $region26: #{tpu_custom_call.1} parent=1 // pred_check
      %p47 = pneg %p46
    $region27: #{tpu_custom_call.1} parent=1 // pred_check_branch
      %49 = sbr.rel (%p47) target = $region29
    $region28: #{tpu_custom_call.1} parent=1 // pred_region
      %vm50 = vcmask 1024
      %51 = vst.msk [vmem:[#allocation2] sm:$0x3] %vm50, -inf
      %52 = vst.msk [vmem:[#allocation3] sm:$0x3] %vm50, 0.0
      %vm53 = vcmask 254976
      %54 = vst.msk [vmem:[#allocation4] sm:$0x3] %vm53, 0.0
    $region29: #{tpu_custom_call.1} parent=1 // pred_fallthru
      _
    %v55 = vld [vmem:[#allocation5] sm:$0xff]
    %v56 = vld [vmem:[#allocation5 + $0x8] sm:$0xff]
    %v57 = vld [vmem:[#allocation8] sm:$0xff]
    %v58 = vld [vmem:[#allocation8 + $0x8] sm:$0xff]
    %v59 = vld [vmem:[#allocation8 + $0x10] sm:$0xff]
    %v60 = vld [vmem:[#allocation8 + $0x18] sm:$0xff]
    %v61 = vld [vmem:[%s2] sm:$0x1]
    %v63 = vlaneseq
    %v64 = vshrl.u32 %v63, 7
    %v65 = vsub.s32 0, %v64
    %v66 = vrot.slane %v61, %v65
    %vm68 = vcmask 261120
    %v70 = vsel %vm68, %v55, 0
    %v73 = vsel %vm68, %v56, 0
    %75 = vmatprep.subr.mxu0 0.0
    %76 = vmatpush1.msra.mxu0 %v57
    %77 = vmatprep.subr.mxu0 0.0
    %78 = vmatpush1.msra.mxu0 %v58
    %79 = vmatprep.subr.mxu0 0.0
    %80 = vmatpush1.msra.mxu0 %v59
    %81 = vmatprep.subr.mxu0 0.0
    %82 = vmatpush1.msra.mxu0 %v60
    %83 = vmatprep.subr.mxu0 0.0
    %84 = vmatpush1.msra.mxu0 0.0
    %85 = vmatprep.subr.mxu0 0.0
    %86 = vmatpush1.msra.mxu0 0.0
    %87 = vmatprep.subr.mxu0 0.0
    %88 = vmatpush1.msra.mxu0 0.0
    %89 = vmatprep.subr.mxu0 0.0
    %90 = vmatpush1.msra.mxu0 0.0
    %91 = vmatprep.subr.mxu0 0.0
    %92 = vmatpush1.msra.mxu0 0.0
    %93 = vmatprep.subr.mxu0 0.0
    %94 = vmatpush1.msra.mxu0 0.0
    %95 = vmatprep.subr.mxu0 0.0
    %96 = vmatpush1.msra.mxu0 0.0
    %97 = vmatprep.subr.mxu0 0.0
    %98 = vmatpush1.msra.mxu0 0.0
    %99 = vmatprep.subr.mxu0 0.0
    %100 = vmatpush1.msra.mxu0 0.0
    %101 = vmatprep.subr.mxu0 0.0
    %102 = vmatpush1.msra.mxu0 0.0
    %103 = vmatprep.subr.mxu0 0.0
    %104 = vmatpush1.msra.mxu0 0.0
    %105 = vmatprep.subr.mxu0 0.0
    %106 = vmatpush1.msra.mxu0 0.0
    %107 = vmatprep.subr.mxu0 0.0
    %108 = vmatpush1.msra.mxu0 0.0
    %109 = vmatprep.subr.mxu0 0.0
    %110 = vmatpush1.msra.mxu0 0.0
    %111 = vmatprep.subr.mxu0 0.0
    %112 = vmatpush1.msra.mxu0 0.0
    %113 = vmatprep.subr.mxu0 0.0
    %114 = vmatpush1.msra.mxu0 0.0
    %115 = vmatprep.subr.mxu0 0.0
    %116 = vmatpush1.msra.mxu0 0.0
    %117 = vmatprep.subr.mxu0 0.0
    %118 = vmatpush1.msra.mxu0 0.0
    %119 = vmatprep.subr.mxu0 0.0
    %120 = vmatpush1.msra.mxu0 0.0
    %121 = vmatprep.subr.mxu0 0.0
    %122 = vmatpush1.msra.mxu0 0.0
    %123 = vmatprep.subr.mxu0 0.0
    %124 = vmatpush1.msra.mxu0 0.0
    %125 = vmatprep.subr.mxu0 0.0
    %126 = vmatpush1.msra.mxu0 0.0
    %127 = vmatprep.subr.mxu0 0.0
    %128 = vmatpush1.msra.mxu0 0.0
    %129 = vmatprep.subr.mxu0 0.0
    %130 = vmatpush1.msra.mxu0 0.0
    %131 = vmatprep.subr.mxu0 0.0
    %132 = vmatpush1.msra.mxu0 0.0
    %133 = vmatprep.subr.mxu0 0.0
    %134 = vmatpush1.msra.mxu0 0.0
    %135 = vmatprep.subr.mxu0 0.0
    %136 = vmatpush1.msra.mxu0 0.0
    %137 = vmatprep.subr.mxu0 0.0
    %138 = vmatpush1.msra.mxu0 0.0
    %139 = vmatprep.mubr.f32.mxu0 0.0
    %140 = vmatmul.mubr.f32.gmra.mrb[0].mxu0 %v70
    %v141 = vpop.f32.mrb[0].mxu0
    %v142 = vadd.f32 %v66, %v141
    %v143 = vpop.f32.mrb[0].mxu0
    %144 = vmatprep.mubr.f32.mxu0 0.0
    %145 = vmatmul.mubr.f32.gmra.mrb[0].mxu0 %v73
    %v146 = vpop.f32.mrb[0].mxu0
    %v147 = vadd.f32 %v66, %v146
    %v148 = vpop.f32.mrb[0].mxu0
    %149 = vdwg.mxu0
    %v150 = vtanh.pop %v142
    %v151 = vtanh.pop %v147
    %v152 = vld [vmem:[%s3] sm:$0x1]
    %v154 = vlaneseq
    %v155 = vshrl.u32 %v154, 7
    %v156 = vsub.s32 0, %v155
    %v157 = vrot.slane %v152, %v156
    %v159 = vmul.f32 %v150, %v157
    %v160 = vmul.f32 %v151, %v157
    %v161 = vsel %vm68, %v159, 0.0
    %162 = vadd.xlane.f32.xlu0 %v161
    %v163 = vpop.xlane.xlu0 %162
    %v164 = vsel %vm68, %v160, 0.0
    %165 = vadd.xlane.f32.xlu0 %v164
    %v166 = vpop.xlane.xlu0 %165
    %v167 = vld [vmem:[#allocation2] sm:$0x3]
    %v168 = vrot.slane %v163, 4
    %v169 = vmax.f32 %v163, %v168
    %v170 = vrot.slane %v169, 2
    %v171 = vmax.f32 %v169, %v170
    %v172 = vrot.slane %v171, 1
    %v173 = vmax.f32 %v171, %v172
    %v174 = vrot.slane %v166, 4
    %v175 = vmax.f32 %v166, %v174
    %v176 = vrot.slane %v175, 2
    %v177 = vmax.f32 %v175, %v176
    %v178 = vrot.slane %v177, 1
    %v179 = vmax.f32 %v177, %v178
    %vm182 = vcmask 1041409
    %v183 = vsel %vm182, %v179, %v173
    %v185 = vmax.f32 %v167, %v183
    %v186 = vsub.f32 %v167, %v185
    %v187 = vmul.f32 %v186, 1.442695
    %v188 = vpow.pop %v187
    %v191 = vunpack.c.l.s4 1966171168
    %v192 = vunpack.c.0.s8 %v191
    %v193 = vlaneseq
    %v194 = vshrl.u32 %v193, 7
    %v195 = vsub.s32 %v192, %v194
    %v196 = vrot.slane %v185, %v195
    %v197 = vcombine.high %v196, %v196
    %v199 = vunpack.c.l.s4 1966171168
    %v200 = vunpack.c.0.s8 %v199
    %v201 = vlaneseq
    %v202 = vshrl.u32 %v201, 7
    %v203 = vsub.s32 %v200, %v202
    %v204 = vrot.slane %v196, %v203
    %v206 = vunpack.c.l.s4 1966171168
    %v207 = vunpack.c.0.s8 %v206
    %v208 = vlaneseq
    %v209 = vshrl.u32 %v208, 7
    %v210 = vsub.s32 %v207, %v209
    %v211 = vrot.slane %v197, %v210
    %v212 = vlaneseq
    %v213 = vshrl.u32 %v212, 7
    %v214 = vsub.s32 0, %v213
    %v215 = vrot.slane %v204, %v214
    %v216 = vlaneseq
    %v217 = vshrl.u32 %v216, 7
    %v218 = vsub.s32 0, %v217
    %v219 = vrot.slane %v211, %v218
    %v222 = vsub.f32 %v163, %v215
    %v223 = vsub.f32 %v166, %v219
    %v224 = vmul.f32 %v222, 1.442695
    %v225 = vpow.pop %v224
    %v226 = vmul.f32 %v223, 1.442695
    %v227 = vpow.pop %v226
    %v228 = vld [vmem:[#allocation3] sm:$0x3]
    %v229 = vmul.f32 %v188, %v228
    %vm230 = vcmask 7168
    %v231 = vsel %vm230, %v225, 0.0
    %v232 = vrot.slane %v231, 4
    %v233 = vadd.f32 %v231, %v232
    %v234 = vrot.slane %v233, 2
    %v235 = vadd.f32 %v233, %v234
    %v236 = vrot.slane %v235, 1
    %v237 = vadd.f32 %v235, %v236
    %v238 = vsel %vm230, %v227, 0.0
    %v239 = vrot.slane %v238, 4
    %v240 = vadd.f32 %v238, %v239
    %v241 = vrot.slane %v240, 2
    %v242 = vadd.f32 %v240, %v241
    %v243 = vrot.slane %v242, 1
    %v244 = vadd.f32 %v242, %v243
    %v247 = vsel %vm182, %v244, %v237
    %v249 = vadd.f32 %v229, %v247
    %vm250 = vcmask 1024
    %251 = vst.msk [vmem:[#allocation3] sm:$0x3] %vm250, %v249
    %253 = vset.pattern.permute.xlu0 0
    %254 = vperm.xlu0 %253, %v225
    %v255 = vpop.permute.xlu0 %254
    %258 = vset.pattern.permute.xlu0 0
    %259 = vperm.xlu0 %258, %v227
    %v260 = vpop.permute.xlu0 %259
    %v262 = vmul.f32 %v55, %v255
    %v263 = vmul.f32 %v56, %v260
    %v264 = vsel %vm68, %v262, 0.0
    %v265 = vrot.slane %v264, 4
    %v266 = vadd.f32 %v264, %v265
    %v267 = vrot.slane %v266, 2
    %v268 = vadd.f32 %v266, %v267
    %v269 = vrot.slane %v268, 1
    %v270 = vadd.f32 %v268, %v269
    %v271 = vsel %vm68, %v263, 0.0
    %v272 = vrot.slane %v271, 4
    %v273 = vadd.f32 %v271, %v272
    %v274 = vrot.slane %v273, 2
    %v275 = vadd.f32 %v273, %v274
    %v276 = vrot.slane %v275, 1
    %v277 = vadd.f32 %v275, %v276
    %v278 = vld [vmem:[#allocation4] sm:$0x3]
    %280 = vset.pattern.permute.xlu0 0
    %281 = vperm.xlu0 %280, %v188
    %v282 = vpop.permute.xlu0 %281
    %v284 = vmul.f32 %v282, %v278
    %v287 = vsel %vm182, %v277, %v270
    %v289 = vadd.f32 %v284, %v287
    %vm290 = vcmask 254976
    %291 = vst.msk [vmem:[#allocation4] sm:$0x3] %vm290, %v289
    %292 = vst.msk [vmem:[#allocation2] sm:$0x3] %vm250, %v185
    // Predicated region
    $region30: #{tpu_custom_call.1} parent=1 // pred_check
      %p293 = pneg %p46
    $region31: #{tpu_custom_call.1} parent=1 // pred_check_branch
      %295 = sbr.rel (%p293) target = $region33
    $region32: #{tpu_custom_call.1} parent=1 // pred_region
      %v296 = vld [vmem:[#allocation3] sm:$0x3]
      %v297 = vrcp.pop %v296
      %v298 = vmul.f32 %v296, %v297
      %v299 = vsub.f32 2.0, %v298
      %v300 = vmul.f32 %v297, %v299
      %v301 = vld [vmem:[#allocation4] sm:$0x3]
      %303 = vset.pattern.permute.xlu0 0
      %304 = vperm.xlu0 %303, %v300
      %v305 = vpop.permute.xlu0 %304
      %v307 = vmul.f32 %v301, %v305
      %308 = vst.msk [vmem:[#allocation10] sm:$0x3] %vm290, %v307
    $region33: #{tpu_custom_call.1} parent=1 // pred_fallthru
      _
    // Predicated region
    $region34: #{tpu_custom_call.1} parent=1 // pred_check
      _
    $region35: #{tpu_custom_call.1} parent=1 // pred_check_branch
      %310 = sbr.rel (0) target = $region37
    $region36: #{tpu_custom_call.1} parent=1 // pred_region
      %s312 = ssub.s32 32, 32
      %313 = vsyncadd [#allocation7], %s312
      %s315 = sshll.u32 [#allocation10], 4
      %s316 = int_to_ptr.vmem [resolvable:$true] %s315
      %318 = dma.vmem_to_hbm [thread:$0]  %s316, 32, %s4, [#allocation7]
    $region37: #{tpu_custom_call.1} parent=1 // pred_fallthru
      _
    // Predicated region
    $region38: #{tpu_custom_call.1} parent=1 // pred_check
      _
    $region39: #{tpu_custom_call.1} parent=1 // pred_check_branch
      %320 = sbr.rel (0) target = $region41
    $region40: #{tpu_custom_call.1} parent=1 // pred_region
      %321 = dma.done [#allocation7], 32
    $region41: #{tpu_custom_call.1} parent=1 // pred_fallthru
      _
    %322 = vsyncpa [#allocation6], 1
    %323 = vsyncpa [#allocation9], 1
    %324 = vsyncpa [#allocation7], 1

</llo_original>
